<compile_context>
chip_gen: v7x
topology: tpu7x:2x2x1
jax: 0.10.0
libtpu: 0.0.40
codegen_flags: <defaults>
</compile_context>

<pallas_src>
import jax
import jax.numpy as jnp
from jax.experimental import pallas as pl
from jax.experimental.pallas import tpu as pltpu


# --------------------------------------------------------------------------
# Constants / small helpers
# --------------------------------------------------------------------------
_LANE_ALIGN = 256                        # tn / tk quantum (2x256^2 MXU on v6e/v7x)
_SUBLANE_ALIGN = 16                      # bf16 sublane packing is (16, 128)
_VMEM_LIMIT_CAP = 48 * 1024 * 1024       # safe scoped limit on v7x (64 MiB/TC)
_RESIDENT_BUDGET = 40 * 1024 * 1024      # budget for the weight-resident path


def _round_up(x, m):
    return ((x + m - 1) // m) * m


def _pick_tile(total, desired, quantum):
    """Largest multiple of `quantum` that is <= desired and divides `total`.

    `total` is always a multiple of `quantum`, so this terminates at worst at
    `quantum`. Avoids padding the M axis just to fit a fixed tile size.
    """
    t = min(desired, total)
    t = max((t // quantum) * quantum, quantum)
    while total % t != 0:
        t -= quantum
    return t


# --------------------------------------------------------------------------
# Kernels
# --------------------------------------------------------------------------
def _projection_resident_kernel(x_ref, wt_ref, b_ref, o_ref):
    """Weight-resident path: one (tm, Np) output slab per grid step.

    x_ref: (tm, Kp) bf16   wt_ref: (Kp, Np) bf16 (resident, constant index)
    b_ref: (1, Np)  f32    o_ref:  (tm, Np) f32
    """
    o_ref[...] = (jnp.dot(x_ref[...], wt_ref[...],
                          preferred_element_type=jnp.float32)
                  + b_ref[...]).astype(o_ref.dtype)


def _projection_tiled_kernel(x_ref, wt_ref, b_ref, o_ref):
    """Tiled path: (tm, tn) output block accumulated over the K grid axis.

    The output block index ignores k, so o_ref stays resident across the K
    axis and doubles as the f32 accumulator (no scratch, no finalize copy).
    """
    k = pl.program_id(2)

    @pl.when(k == 0)
    def _():
        # Fold the bias into the accumulator init (runs once per output tile).
        o_ref[...] = jnp.broadcast_to(b_ref[...], o_ref.shape).astype(o_ref.dtype)

    # Single accumulate statement -> MRB in-place accumulation on v7x.
    o_ref[...] += jnp.dot(x_ref[...], wt_ref[...],
                          preferred_element_type=jnp.float32)


# --------------------------------------------------------------------------
# Parameter preparation (hoisted out of the per-call path)
# --------------------------------------------------------------------------
def prepare_projection_params(weight, bias, *, compute_dtype=jnp.bfloat16):
    """weight: (out_channels, in_channels), bias: (out_channels,).

    Returns (wt, b2): W transposed to (Kp, Np) in `compute_dtype` and bias as
    (1, Np) f32, both zero-padded to 256-multiples (exact for the matmul).
    """
    n, k = weight.shape
    kp = _round_up(k, _LANE_ALIGN)
    np_ = _round_up(n, _LANE_ALIGN)

    wt = jnp.transpose(weight).astype(compute_dtype)          # (K, N)
    if (kp, np_) != (k, n):
        wt = jnp.pad(wt, ((0, kp - k), (0, np_ - n)))

    b2 = bias.reshape(1, n).astype(jnp.float32)
    if np_ != n:
        b2 = jnp.pad(b2, ((0, 0), (0, np_ - n)))
    return wt, b2


# --------------------------------------------------------------------------
# Forward: y = x @ W.T + b over the last axis of x.
# --------------------------------------------------------------------------
def _projection_forward(x, wt, b2, n_out, *, tm=256, tn=512, tk=2048):
    lead = x.shape[:-1]
    K = x.shape[-1]
    Kp, Np = wt.shape
    itemsize = jnp.dtype(wt.dtype).itemsize

    M = 1
    for d in lead:
        M *= d

    x2 = x.reshape(M, K).astype(wt.dtype)
    Mp = _round_up(max(M, 1), _SUBLANE_ALIGN)
    if (Mp, Kp) != (M, K):
        # Zero padding is exact for the matmul and the bias add.
        x2 = jnp.pad(x2, ((0, Mp - M), (0, Kp - K)))

    vmem_floor = 32 * 1024 * 1024

    # ---------------- Path A: weight-resident, 1-D grid over M -------------
    tm_a = _pick_tile(Mp, tm, _SUBLANE_ALIGN)
    resident_bytes = ((2 * Kp * Np + 2 * tm_a * Kp) * itemsize     # W + x (dbl-buf)
                      + (2 * tm_a * Np + 2 * Np) * 4)              # out + bias (f32)

    if resident_bytes <= _RESIDENT_BUDGET:
        # Keep >= 2 M-tiles when possible so the parallel axis feeds both
        # TensorCores on v7x megacore.
        if Mp // tm_a < 2:
            half = Mp // 2
            if half >= _SUBLANE_ALIGN and half % _SUBLANE_ALIGN == 0:
                tm_a = half

        grid = (Mp // tm_a,)
        vmem_limit = min(_VMEM_LIMIT_CAP,
                         max(vmem_floor, int(resident_bytes * 1.25)))
        cost = pl.CostEstimate(
            flops=2 * Mp * Np * Kp,
            transcendentals=0,
            bytes_accessed=(Mp * Kp + Kp * Np) * itemsize + (Mp * Np + Np) * 4,
        )

        out = pl.pallas_call(
            _projection_resident_kernel,
            out_shape=jax.ShapeDtypeStruct((Mp, Np), jnp.float32),
            grid_spec=pltpu.PrefetchScalarGridSpec(
                num_scalar_prefetch=0,
                grid=grid,
                in_specs=[
                    pl.BlockSpec((tm_a, Kp), lambda i: (i, 0)),   # x stream
                    pl.BlockSpec((Kp, Np), lambda i: (0, 0)),     # W resident
                    pl.BlockSpec((1, Np), lambda i: (0, 0)),      # bias
                ],
                out_specs=pl.BlockSpec((tm_a, Np), lambda i: (i, 0)),
            ),
            compiler_params=pltpu.CompilerParams(
                dimension_semantics=("parallel",),
                vmem_limit_bytes=vmem_limit,
            ),
            cost_estimate=cost,
        )(x2, wt, b2)

    # ---------------- Path B: tiled 3-D grid (large K*N) -------------------
    else:
        tm_b = _pick_tile(Mp, tm, _SUBLANE_ALIGN)
        tn_b = _pick_tile(Np, tn, _LANE_ALIGN)
        tk_b = _pick_tile(Kp, tk, _LANE_ALIGN)
        grid = (Mp // tm_b, Np // tn_b, Kp // tk_b)

        tile_bytes = ((2 * tm_b * tk_b + 2 * tk_b * tn_b) * itemsize
                      + 2 * tm_b * tn_b * 4 + 2 * tn_b * 4)
        vmem_limit = min(_VMEM_LIMIT_CAP,
                         max(vmem_floor, int(tile_bytes * 1.5)))
        cost = pl.CostEstimate(
            flops=2 * Mp * Np * Kp,
            transcendentals=0,
            bytes_accessed=((Np // tn_b) * Mp * Kp * itemsize      # x re-reads
                            + (Mp // tm_b) * Kp * Np * itemsize    # W re-reads
                            + Mp * Np * 4 + Np * 4),
        )

        out = pl.pallas_call(
            _projection_tiled_kernel,
            out_shape=jax.ShapeDtypeStruct((Mp, Np), jnp.float32),
            grid_spec=pltpu.PrefetchScalarGridSpec(
                num_scalar_prefetch=0,
                grid=grid,
                in_specs=[
                    pl.BlockSpec((tm_b, tk_b), lambda i, j, k: (i, k)),   # x tile
                    pl.BlockSpec((tk_b, tn_b), lambda i, j, k: (k, j)),   # W.T tile
                    pl.BlockSpec((1, tn_b), lambda i, j, k: (0, j)),      # bias tile
                ],
                out_specs=pl.BlockSpec((tm_b, tn_b), lambda i, j, k: (i, j)),
            ),
            compiler_params=pltpu.CompilerParams(
                dimension_semantics=("parallel", "parallel", "arbitrary"),
                vmem_limit_bytes=vmem_limit,
            ),
            cost_estimate=cost,
        )(x2, wt, b2)

    return out[:M, :n_out].reshape(*lead, n_out)


def make_projection(weight, bias, *, compute_dtype=jnp.bfloat16,
                    tm=256, tn=512, tk=2048):
    """Build a jitted forward for nn.Linear weights (PyTorch layout).

    Parameter transpose / cast / padding happens once here, not per call.
    """
    wt, b2 = prepare_projection_params(weight, bias, compute_dtype=compute_dtype)
    n_out = weight.shape[0]

    def apply(x):
        return _projection_forward(x, wt, b2, n_out, tm=tm, tn=tn, tk=tk)

    return jax.jit(apply)


# --------------------------------------------------------------------------
# Demo / correctness check.
# --------------------------------------------------------------------------
if __name__ == "__main__":
    B, L, C_IN, C_OUT = 2, 16, 32, 64          # x: (batch, seq, in_channels)

    key = jax.random.PRNGKey(0)
    kx, kw, kb = jax.random.split(key, 3)

    x = jax.random.normal(kx, (B, L, C_IN), jnp.float32)
    # nn.Linear default init: U(-1/sqrt(in), 1/sqrt(in)) for weight and bias.
    s = 1.0 / (C_IN ** 0.5)
    weight = jax.random.uniform(kw, (C_OUT, C_IN), jnp.float32, -s, s)
    bias = jax.random.uniform(kb, (C_OUT,), jnp.float32, -s, s)

    proj = make_projection(weight, bias)
    y = proj(x)
    jax.block_until_ready(y)

    ref = x @ weight.T + bias
    assert y.shape == (B, L, C_OUT)
    assert bool(jnp.all(jnp.isfinite(y)))
    # bf16 operands with an f32 accumulator: ~1e-2-level agreement vs f32 ref.
    assert bool(jnp.allclose(y, ref, atol=5e-2, rtol=5e-2))
    print("KERNEL_OK")
</pallas_src>

<mosaic_0001>
module attributes {stable_mosaic.version = 11 : i64} {
  func.func @_projection_resident_kernel(%arg0: i32, %arg1: memref<16x256xbf16, #tpu.memory_space<vmem>>, %arg2: memref<256x256xbf16, #tpu.memory_space<vmem>>, %arg3: memref<1x256xf32, #tpu.memory_space<vmem>>, %arg4: memref<16x256xf32, #tpu.memory_space<vmem>>) attributes {dimension_semantics = [#tpu.dimension_semantics<parallel>], iteration_bounds = array<i64: 2>, scalar_prefetch = 0 : i64, scratch_operands = 0 : i64, tpu.core_type = #tpu.core_type<tc>, window_params = [{transform_indices = @transform_0, window_bounds = array<i64: 16, 256>}, {pipeline_mode = #tpu.pipeline_mode<synchronous>, transform_indices = @transform_1, window_bounds = array<i64: 256, 256>}, {pipeline_mode = #tpu.pipeline_mode<synchronous>, transform_indices = @transform_2, window_bounds = array<i64: 1, 256>}, {transform_indices = @transform_3, window_bounds = array<i64: 16, 256>}]} {
    %c0 = arith.constant 0 : index
    %c0_0 = arith.constant 0 : index
    %0 = vector.load %arg1[%c0, %c0_0] : memref<16x256xbf16, #tpu.memory_space<vmem>>, vector<16x256xbf16>
    %c0_1 = arith.constant 0 : index
    %c0_2 = arith.constant 0 : index
    %1 = vector.load %arg2[%c0_1, %c0_2] : memref<256x256xbf16, #tpu.memory_space<vmem>>, vector<256x256xbf16>
    %cst = arith.constant dense<0.000000e+00> : vector<16x256xf32>
    %2 = tpu.matmul %0, %1, %cst {dimension_numbers = #tpu.dot_dimension_numbers<[1], [0], [0], [1], [0, 0, 1, 1], [], []>} : vector<16x256xbf16>, vector<256x256xbf16>, vector<16x256xf32> -> vector<16x256xf32>
    %c0_3 = arith.constant 0 : index
    %c0_4 = arith.constant 0 : index
    %3 = vector.load %arg3[%c0_3, %c0_4] : memref<1x256xf32, #tpu.memory_space<vmem>>, vector<1x256xf32>
    %4 = vector.broadcast %3 : vector<1x256xf32> to vector<16x256xf32>
    %5 = arith.addf %2, %4 : vector<16x256xf32>
    %c0_5 = arith.constant 0 : index
    %c0_6 = arith.constant 0 : index
    %6 = vector.load %arg4[%c0_5, %c0_6] : memref<16x256xf32, #tpu.memory_space<vmem>>, vector<16x256xf32>
    tpu.vector_store %arg4[%c0_5, %c0_6], %5 {strides = array<i32>} : memref<16x256xf32, #tpu.memory_space<vmem>>, vector<16x256xf32>,
    return
  }
  func.func @transform_0(%arg0: i32) -> (i32, i32) {
    %c0_i32 = arith.constant 0 : i32
    %c0_i32_0 = arith.constant 0 : i32
    return %arg0, %c0_i32 : i32, i32
  }
  func.func @transform_1(%arg0: i32) -> (i32, i32) {
    %c0_i32 = arith.constant 0 : i32
    %c0_i32_0 = arith.constant 0 : i32
    %c0_i32_1 = arith.constant 0 : i32
    return %c0_i32, %c0_i32_0 : i32, i32
  }
  func.func @transform_2(%arg0: i32) -> (i32, i32) {
    %c0_i32 = arith.constant 0 : i32
    %c0_i32_0 = arith.constant 0 : i32
    %c0_i32_1 = arith.constant 0 : i32
    return %c0_i32, %c0_i32_0 : i32, i32
  }
  func.func @transform_3(%arg0: i32) -> (i32, i32) {
    %c0_i32 = arith.constant 0 : i32
    %c0_i32_0 = arith.constant 0 : i32
    return %arg0, %c0_i32 : i32, i32
  }
}

</mosaic_0001>

<llo_original>
// kernel: apply.1
$region0: #{apply.1}
  #allocation0 [shape = 'u32[]', space=smem, size = 0x4, offset = 0x4, fixed_abs, tag = 'smem constant byte address 0x4 - core index']
  #allocation1 [shape = 'u32[144,128]{1,0:T(1,128)}', space=vmem, size = 0x12000, scoped, tag = 'internal scratch']
  %s0 = inlined_call_operand.vmem [shape: bf16[32,256], index: 0, kind: input, shape index: {}]
  %s1 = inlined_call_operand.vmem [shape: bf16[256,256], index: 1, kind: input, shape index: {}]
  %s2 = inlined_call_operand.vmem [shape: f32[1,256], index: 2, kind: input, shape index: {}]
  %s3 = inlined_call_operand.vmem [shape: f32[32,256], index: 3, kind: output, shape index: {}]
  %s4 = sld [smem:[#allocation0]]
  $region45: #{apply.1} parent=0
    _
  %s6 = ssub.s32 1, %s4
  %s7 = scalar_select 0, %s6, %s4
  loop: start=0, step=1, limit=4
  $region2: #{apply.1} parent=0 // loop_pre_header
    _
  $region3: #{apply.1} parent=0 // loop_header
    %s9 = sphi 0, %s13
    %p10 = scmp.ge.s32.totalorder %s9, 4
    %s19 = sphi 0, %s21
    %s22 = sphi 0, %s19
    %s23 = sphi 0, %s22
    %s39 = sphi 0, %s23
    %s43 = sphi 0, %s43
    %s45 = sphi 0, %s43
    %s46 = sphi 0, %s45
    %s60 = sphi 0, %s46
    %s64 = sphi 0, %s64
    %s66 = sphi 0, %s64
    %s67 = sphi 0, %s66
    %s81 = sphi 0, %s67
    %s87 = sphi 0, %s89
    %s90 = sphi 0, %s87
    %s91 = sphi 0, %s90
    %s107 = sphi 0, %s91
  $region4: #{apply.1} parent=0 // loop_header_branch
    %12 = sbr.rel (%p10) target = $region8
  $region5: #{apply.1} parent=0 // loop_body
    %s14 = ssub.s32 %s9, 1
    %s15 = ssub.s32 %s9, 2
    %s16 = sadd.s32 %s9, 1
    %s17 = ssub.s32 %s9, %s16
    %p18 = scmp.eq.s32.totalorder %s17, 0
    %s20 = sadd.s32 %s19, 1
    %s21 = scalar_select %p18, %s19, %s20
    %p24 = pneg %p18
    %p25 = scmp.eq.s32.totalorder %s9, 1
    %p26 = por %p24, %p25
    %p27 = scmp.ne.s32.totalorder %s19, %s22
    %p28 = scmp.eq.s32.totalorder %s9, 0
    %p29 = por %p27, %p28
    %p30 = scmp.ne.s32.totalorder %s19, %s22
    %p31 = scmp.eq.s32.totalorder %s14, 1
    %p32 = por %p30, %p31
    %p33 = scmp.ne.s32.totalorder %s22, %s23
    %p34 = scmp.eq.s32.totalorder %s14, 0
    %p35 = por %p33, %p34
    %p36 = scmp.ne.s32.totalorder %s22, %s23
    %p37 = scmp.eq.s32.totalorder %s15, 1
    %p38 = por %p36, %p37
    %p40 = scmp.ne.s32.totalorder %s23, %s39
    %p41 = scmp.eq.s32.totalorder %s15, 0
    %p42 = por %p40, %p41
    %s44 = sadd.s32 %s43, 1
    %p47 = scmp.eq.s32.totalorder %s9, 1
    %p48 = scmp.ne.s32.totalorder %s43, %s45
    %p49 = scmp.eq.s32.totalorder %s9, 0
    %p50 = por %p48, %p49
    %p51 = scmp.ne.s32.totalorder %s43, %s45
    %p52 = scmp.eq.s32.totalorder %s14, 1
    %p53 = por %p51, %p52
    %p54 = scmp.ne.s32.totalorder %s45, %s46
    %p55 = scmp.eq.s32.totalorder %s14, 0
    %p56 = por %p54, %p55
    %p57 = scmp.ne.s32.totalorder %s45, %s46
    %p58 = scmp.eq.s32.totalorder %s15, 1
    %p59 = por %p57, %p58
    %p61 = scmp.ne.s32.totalorder %s46, %s60
    %p62 = scmp.eq.s32.totalorder %s15, 0
    %p63 = por %p61, %p62
    %s65 = sadd.s32 %s64, 1
    %p68 = scmp.eq.s32.totalorder %s9, 1
    %p69 = scmp.ne.s32.totalorder %s64, %s66
    %p70 = scmp.eq.s32.totalorder %s9, 0
    %p71 = por %p69, %p70
    %p72 = scmp.ne.s32.totalorder %s64, %s66
    %p73 = scmp.eq.s32.totalorder %s14, 1
    %p74 = por %p72, %p73
    %p75 = scmp.ne.s32.totalorder %s66, %s67
    %p76 = scmp.eq.s32.totalorder %s14, 0
    %p77 = por %p75, %p76
    %p78 = scmp.ne.s32.totalorder %s66, %s67
    %p79 = scmp.eq.s32.totalorder %s15, 1
    %p80 = por %p78, %p79
    %p82 = scmp.ne.s32.totalorder %s67, %s81
    %p83 = scmp.eq.s32.totalorder %s15, 0
    %p84 = por %p82, %p83
    %s85 = ssub.s32 %s9, %s16
    %p86 = scmp.eq.s32.totalorder %s85, 0
    %s88 = sadd.s32 %s87, 1
    %s89 = scalar_select %p86, %s87, %s88
    %p92 = pneg %p86
    %p93 = scmp.eq.s32.totalorder %s9, 1
    %p94 = por %p92, %p93
    %p95 = scmp.ne.s32.totalorder %s87, %s90
    %p96 = scmp.eq.s32.totalorder %s9, 0
    %p97 = por %p95, %p96
    %p98 = scmp.ne.s32.totalorder %s87, %s90
    %p99 = scmp.eq.s32.totalorder %s14, 1
    %p100 = por %p98, %p99
    %p101 = scmp.ne.s32.totalorder %s90, %s91
    %p102 = scmp.eq.s32.totalorder %s14, 0
    %p103 = por %p101, %p102
    %p104 = scmp.ne.s32.totalorder %s90, %s91
    %p105 = scmp.eq.s32.totalorder %s15, 1
    %p106 = por %p104, %p105
    %p108 = scmp.ne.s32.totalorder %s91, %s107
    %p109 = scmp.eq.s32.totalorder %s15, 0
    %p110 = por %p108, %p109
    %p111 = scmp.le.s32.totalorder 1, %s9
    %p112 = scmp.lt.s32.totalorder %s9, 3
    %p113 = pnand %p111, %p112
    %p114 = pneg %p113
    // Predicated region
    $region9: #{apply.1} parent=5 // pred_check
      _
    $region10: #{apply.1} parent=5 // pred_check_branch
      %116 = sbr.rel (%p113) target = $region12
    $region11: #{apply.1} parent=5 // pred_region
      %s117 = ssub.s32 %s9, 1
      // Predicated region
      $region13: #{apply.1} parent=11 // pred_check
        %p118 = pneg %p56
      $region14: #{apply.1} parent=11 // pred_check_branch
        %120 = sbr.rel (%p118) target = $region16
      $region15: #{apply.1} parent=11 // pred_region
        _
      $region16: #{apply.1} parent=11 // pred_fallthru
        _
      // Predicated region
      $region17: #{apply.1} parent=11 // pred_check
        %p121 = pneg %p77
      $region18: #{apply.1} parent=11 // pred_check_branch
        %123 = sbr.rel (%p121) target = $region20
      $region19: #{apply.1} parent=11 // pred_region
        _
      $region20: #{apply.1} parent=11 // pred_fallthru
        _
    $region12: #{apply.1} parent=5 // pred_fallthru
      _
    %p124 = scmp.lt.s32.totalorder %s9, 2
    // Predicated region
    $region21: #{apply.1} parent=5 // pred_check
      %p125 = pneg %p124
    $region22: #{apply.1} parent=5 // pred_check_branch
      %127 = sbr.rel (%p125) target = $region24
    $region23: #{apply.1} parent=5 // pred_region
      // Predicated region
      $region25: #{apply.1} parent=23 // pred_check
        %p128 = pneg %p29
      $region26: #{apply.1} parent=23 // pred_check_branch
        %130 = sbr.rel (%p128) target = $region28
      $region27: #{apply.1} parent=23 // pred_region
        %s131 = smul.u32 2, %s9
        %p132 = scmp.lt.s32.totalorder %s131, 3
        %s133 = scalar_select %p132, %s131, 3
        %s134 = smul.addr %s133, 2
        %s135 = smul.addr %s134, 4
        %s136 = scalar_lea.vmem %s0, %s135
        %s137 = smul.u32 2, %s9
      $region28: #{apply.1} parent=23 // pred_fallthru
        _
    $region24: #{apply.1} parent=5 // pred_fallthru
      _
    %p138 = scmp.le.s32.totalorder 1, %s9
    %p139 = scmp.lt.s32.totalorder %s9, 3
    %p140 = pnand %p138, %p139
    %p141 = pneg %p140
    // Predicated region
    $region29: #{apply.1} parent=5 // pred_check
      _
    $region30: #{apply.1} parent=5 // pred_check_branch
      %143 = sbr.rel (%p140) target = $region32
    $region31: #{apply.1} parent=5 // pred_region
      %s144 = ssub.s32 %s9, 1
      %s145 = smul.u32 2, %s14
      %p146 = scmp.lt.s32.totalorder %s145, 3
      %s147 = scalar_select %p146, %s145, 3
      %s148 = smul.addr %s147, 2
      %s149 = smul.addr %s148, 4
      %s150 = scalar_lea.vmem %s0, %s149
      %p151 = pneg %p35
      %p152 = pneg %p32
      %p153 = pneg %p56
      %p154 = pneg %p53
      %p155 = pneg %p77
      %p156 = pneg %p74
      %p157 = pneg %p103
      %p158 = pneg %p100
      %s159 = smul.u32 2, %s14
      %p160 = scmp.lt.s32.totalorder %s159, 3
      %s161 = scalar_select %p160, %s159, 3
      %s162 = smul.addr %s161, 2
      %s163 = smul.addr %s162, 8
      %s164 = scalar_lea.vmem %s3, %s163
      %s165 = smul.u32 2, %s14
      %p166 = scmp.lt.s32.totalorder %s165, 3
      %s167 = scalar_select %p166, %s165, 3
      %s168 = smul.addr %s167, 2
      %s169 = smul.addr %s168, 4
      %s170 = scalar_lea.vmem %s0, %s169
      %s171 = smul.u32 2, %s14
      %s172 = smul.u32 2, %s14
      %p173 = scmp.lt.s32.totalorder %s172, 3
      %s174 = scalar_select %p173, %s172, 3
      %s175 = smul.addr %s174, 2
      %s176 = smul.addr %s175, 8
      %s177 = scalar_lea.vmem %s3, %s176
      %s178 = smul.u32 2, %s14
      %v179 = vld [vmem:[%s170] sm:$0xff]
      %v180 = vld [vmem:[%s170 + $0x8] sm:$0xff]
      %v181 = vld [vmem:[%s1] sm:$0xff]
      %v182 = vld [vmem:[%s1 + $0x8] sm:$0xff]
      %v183 = vld [vmem:[%s1 + $0x10] sm:$0xff]
      %v184 = vld [vmem:[%s1 + $0x18] sm:$0xff]
      %v185 = vld [vmem:[%s1 + $0x20] sm:$0xff]
      %v186 = vld [vmem:[%s1 + $0x28] sm:$0xff]
      %v187 = vld [vmem:[%s1 + $0x30] sm:$0xff]
      %v188 = vld [vmem:[%s1 + $0x38] sm:$0xff]
      %v189 = vld [vmem:[%s1 + $0x40] sm:$0xff]
      %v190 = vld [vmem:[%s1 + $0x48] sm:$0xff]
      %v191 = vld [vmem:[%s1 + $0x50] sm:$0xff]
      %v192 = vld [vmem:[%s1 + $0x58] sm:$0xff]
      %v193 = vld [vmem:[%s1 + $0x60] sm:$0xff]
      %v194 = vld [vmem:[%s1 + $0x68] sm:$0xff]
      %v195 = vld [vmem:[%s1 + $0x70] sm:$0xff]
      %v196 = vld [vmem:[%s1 + $0x78] sm:$0xff]
      %v197 = vld [vmem:[%s1 + $0x80] sm:$0xff]
      %v198 = vld [vmem:[%s1 + $0x88] sm:$0xff]
      %v199 = vld [vmem:[%s1 + $0x90] sm:$0xff]
      %v200 = vld [vmem:[%s1 + $0x98] sm:$0xff]
      %v201 = vld [vmem:[%s1 + $0xa0] sm:$0xff]
      %v202 = vld [vmem:[%s1 + $0xa8] sm:$0xff]
      %v203 = vld [vmem:[%s1 + $0xb0] sm:$0xff]
      %v204 = vld [vmem:[%s1 + $0xb8] sm:$0xff]
      %v205 = vld [vmem:[%s1 + $0xc0] sm:$0xff]
      %v206 = vld [vmem:[%s1 + $0xc8] sm:$0xff]
      %v207 = vld [vmem:[%s1 + $0xd0] sm:$0xff]
      %v208 = vld [vmem:[%s1 + $0xd8] sm:$0xff]
      %v209 = vld [vmem:[%s1 + $0xe0] sm:$0xff]
      %v210 = vld [vmem:[%s1 + $0xe8] sm:$0xff]
      %v211 = vld [vmem:[%s1 + $0xf0] sm:$0xff]
      %v212 = vld [vmem:[%s1 + $0xf8] sm:$0xff]
      %v213 = vld [vmem:[%s2] sm:$0x3]
      %v215 = vlaneseq
      %v216 = vshrl.u32 %v215, 7
      %v217 = vsub.s32 0, %v216
      %v218 = vrot.slane %v213, %v217
      %v219 = vlaneseq
      %v220 = vshrl.u32 %v219, 7
      %v221 = vsub.s32 1, %v220
      %v222 = vrot.slane %v213, %v221
      %v227 = vunpack.c.l.b16 %v179
      %v228 = vunpack.c.h.b16 %v179
      %v229 = vunpack.c.l.b16 %v180
      %v230 = vunpack.c.h.b16 %v180
      %v231 = vpack.c.b16 %v229, %v227
      %v232 = vpack.c.b16 %v230, %v228
      %v267 = vunpack.c.l.b16 %v181
      %v268 = vunpack.c.h.b16 %v181
      %v269 = vunpack.c.l.b16 %v182
      %v270 = vunpack.c.h.b16 %v182
      %v271 = vunpack.c.l.b16 %v183
      %v272 = vunpack.c.h.b16 %v183
      %v273 = vunpack.c.l.b16 %v184
      %v274 = vunpack.c.h.b16 %v184
      %v275 = vunpack.c.l.b16 %v185
      %v276 = vunpack.c.h.b16 %v185
      %v277 = vunpack.c.l.b16 %v186
      %v278 = vunpack.c.h.b16 %v186
      %v279 = vunpack.c.l.b16 %v187
      %v280 = vunpack.c.h.b16 %v187
      %v281 = vunpack.c.l.b16 %v188
      %v282 = vunpack.c.h.b16 %v188
      %v283 = vunpack.c.l.b16 %v189
      %v284 = vunpack.c.h.b16 %v189
      %v285 = vunpack.c.l.b16 %v190
      %v286 = vunpack.c.h.b16 %v190
      %v287 = vunpack.c.l.b16 %v191
      %v288 = vunpack.c.h.b16 %v191
      %v289 = vunpack.c.l.b16 %v192
      %v290 = vunpack.c.h.b16 %v192
      %v291 = vunpack.c.l.b16 %v193
      %v292 = vunpack.c.h.b16 %v193
      %v293 = vunpack.c.l.b16 %v194
      %v294 = vunpack.c.h.b16 %v194
      %v295 = vunpack.c.l.b16 %v195
      %v296 = vunpack.c.h.b16 %v195
      %v297 = vunpack.c.l.b16 %v196
      %v298 = vunpack.c.h.b16 %v196
      %v299 = vunpack.c.l.b16 %v197
      %v300 = vunpack.c.h.b16 %v197
      %v301 = vunpack.c.l.b16 %v198
      %v302 = vunpack.c.h.b16 %v198
      %v303 = vunpack.c.l.b16 %v199
      %v304 = vunpack.c.h.b16 %v199
      %v305 = vunpack.c.l.b16 %v200
      %v306 = vunpack.c.h.b16 %v200
      %v307 = vunpack.c.l.b16 %v201
      %v308 = vunpack.c.h.b16 %v201
      %v309 = vunpack.c.l.b16 %v202
      %v310 = vunpack.c.h.b16 %v202
      %v311 = vunpack.c.l.b16 %v203
      %v312 = vunpack.c.h.b16 %v203
      %v313 = vunpack.c.l.b16 %v204
      %v314 = vunpack.c.h.b16 %v204
      %v315 = vunpack.c.l.b16 %v205
      %v316 = vunpack.c.h.b16 %v205
      %v317 = vunpack.c.l.b16 %v206
      %v318 = vunpack.c.h.b16 %v206
      %v319 = vunpack.c.l.b16 %v207
      %v320 = vunpack.c.h.b16 %v207
      %v321 = vunpack.c.l.b16 %v208
      %v322 = vunpack.c.h.b16 %v208
      %v323 = vunpack.c.l.b16 %v209
      %v324 = vunpack.c.h.b16 %v209
      %v325 = vunpack.c.l.b16 %v210
      %v326 = vunpack.c.h.b16 %v210
      %v327 = vunpack.c.l.b16 %v211
      %v328 = vunpack.c.h.b16 %v211
      %v329 = vunpack.c.l.b16 %v212
      %v330 = vunpack.c.h.b16 %v212
      %v331 = vpack.c.b16 %v269, %v267
      %v332 = vpack.c.b16 %v270, %v268
      %v333 = vpack.c.b16 %v273, %v271
      %v334 = vpack.c.b16 %v274, %v272
      %v335 = vpack.c.b16 %v277, %v275
      %v336 = vpack.c.b16 %v278, %v276
      %v337 = vpack.c.b16 %v281, %v279
      %v338 = vpack.c.b16 %v282, %v280
      %v339 = vpack.c.b16 %v285, %v283
      %v340 = vpack.c.b16 %v286, %v284
      %v341 = vpack.c.b16 %v289, %v287
      %v342 = vpack.c.b16 %v290, %v288
      %v343 = vpack.c.b16 %v293, %v291
      %v344 = vpack.c.b16 %v294, %v292
      %v345 = vpack.c.b16 %v297, %v295
      %v346 = vpack.c.b16 %v298, %v296
      %v347 = vpack.c.b16 %v301, %v299
      %v348 = vpack.c.b16 %v302, %v300
      %v349 = vpack.c.b16 %v305, %v303
      %v350 = vpack.c.b16 %v306, %v304
      %v351 = vpack.c.b16 %v309, %v307
      %v352 = vpack.c.b16 %v310, %v308
      %v353 = vpack.c.b16 %v313, %v311
      %v354 = vpack.c.b16 %v314, %v312
      %v355 = vpack.c.b16 %v317, %v315
      %v356 = vpack.c.b16 %v318, %v316
      %v357 = vpack.c.b16 %v321, %v319
      %v358 = vpack.c.b16 %v322, %v320
      %v359 = vpack.c.b16 %v325, %v323
      %v360 = vpack.c.b16 %v326, %v324
      %v361 = vpack.c.b16 %v329, %v327
      %v362 = vpack.c.b16 %v330, %v328
      %395 = vmatprep.subr.bf16.mxu0 %v332
      %396 = vmatpush1.bf16.msra.mxu0 %v331
      %397 = vmatprep.subr.bf16.mxu0 %v334
      %398 = vmatpush1.bf16.msra.mxu0 %v333
      %399 = vmatprep.subr.bf16.mxu0 %v336
      %400 = vmatpush1.bf16.msra.mxu0 %v335
      %401 = vmatprep.subr.bf16.mxu0 %v338
      %402 = vmatpush1.bf16.msra.mxu0 %v337
      %403 = vmatprep.subr.bf16.mxu0 %v340
      %404 = vmatpush1.bf16.msra.mxu0 %v339
      %405 = vmatprep.subr.bf16.mxu0 %v342
      %406 = vmatpush1.bf16.msra.mxu0 %v341
      %407 = vmatprep.subr.bf16.mxu0 %v344
      %408 = vmatpush1.bf16.msra.mxu0 %v343
      %409 = vmatprep.subr.bf16.mxu0 %v346
      %410 = vmatpush1.bf16.msra.mxu0 %v345
      %411 = vmatprep.subr.bf16.mxu0 %v348
      %412 = vmatpush1.bf16.msra.mxu0 %v347
      %413 = vmatprep.subr.bf16.mxu0 %v350
      %414 = vmatpush1.bf16.msra.mxu0 %v349
      %415 = vmatprep.subr.bf16.mxu0 %v352
      %416 = vmatpush1.bf16.msra.mxu0 %v351
      %417 = vmatprep.subr.bf16.mxu0 %v354
      %418 = vmatpush1.bf16.msra.mxu0 %v353
      %419 = vmatprep.subr.bf16.mxu0 %v356
      %420 = vmatpush1.bf16.msra.mxu0 %v355
      %421 = vmatprep.subr.bf16.mxu0 %v358
      %422 = vmatpush1.bf16.msra.mxu0 %v357
      %423 = vmatprep.subr.bf16.mxu0 %v360
      %424 = vmatpush1.bf16.msra.mxu0 %v359
      %425 = vmatprep.subr.bf16.mxu0 %v362
      %426 = vmatpush1.bf16.msra.mxu0 %v361
      %427 = vmatprep.mubr.bf16.mxu0 %v232
      %428 = vmatmul.mubr.bf16.gmra.mrb[0].mxu0 %v231
      %v429 = vpop.f32.mrb[0].mxu0
      %v430 = vadd.f32 %v218, %v429
      %v431 = vpop.f32.mrb[0].mxu0
      %v432 = vadd.f32 %v222, %v431
      %v433 = vpop.f32.mrb[0].mxu0
      %v434 = vadd.f32 %v218, %v433
      %v435 = vpop.f32.mrb[0].mxu0
      %v436 = vadd.f32 %v222, %v435
      %437 = vdwg.mxu0
      %438 = vst [vmem:[%s177] sm:$0xff] %v430
      %439 = vst [vmem:[%s177 + $0x8] sm:$0xff] %v432
      %440 = vst [vmem:[%s177 + $0x10] sm:$0xff] %v434
      %441 = vst [vmem:[%s177 + $0x18] sm:$0xff] %v436
      %s442 = smul.u32 2, %s14
      %p443 = scmp.lt.s32.totalorder %s442, 3
      %s444 = scalar_select %p443, %s442, 3
      %s445 = smul.addr %s444, 2
      %s446 = smul.addr %s445, 8
      %s447 = scalar_lea.vmem %s3, %s446
      // Predicated region
      $region33: #{apply.1} parent=31 // pred_check
        %p448 = pneg %p100
      $region34: #{apply.1} parent=31 // pred_check_branch
        %450 = sbr.rel (%p448) target = $region36
      $region35: #{apply.1} parent=31 // pred_region
        %s451 = smul.u32 2, %s14
      $region36: #{apply.1} parent=31 // pred_fallthru
        _
    $region32: #{apply.1} parent=5 // pred_fallthru
      _
    %p452 = scmp.le.s32.totalorder 2, %s9
    // Predicated region
    $region37: #{apply.1} parent=5 // pred_check
      %p453 = pneg %p452
    $region38: #{apply.1} parent=5 // pred_check_branch
      %455 = sbr.rel (%p453) target = $region40
    $region39: #{apply.1} parent=5 // pred_region
      %s456 = ssub.s32 %s9, 2
      // Predicated region
      $region41: #{apply.1} parent=39 // pred_check
        %p457 = pneg %p106
      $region42: #{apply.1} parent=39 // pred_check_branch
        %459 = sbr.rel (%p457) target = $region44
      $region43: #{apply.1} parent=39 // pred_region
        %s460 = smul.u32 2, %s15
        %p461 = scmp.lt.s32.totalorder %s460, 3
        %s462 = scalar_select %p461, %s460, 3
        %s463 = smul.addr %s462, 2
        %s464 = smul.addr %s463, 8
        %s465 = scalar_lea.vmem %s3, %s464
      $region44: #{apply.1} parent=39 // pred_fallthru
        _
    $region40: #{apply.1} parent=5 // pred_fallthru
      _
  $region6: #{apply.1} parent=0 // loop_footer
    %s13 = sadd.s32 1, %s9
  $region7: #{apply.1} parent=0 // loop_footer_branch
    %8 = sbr.rel target = $region3
  $region8: #{apply.1} parent=0 // loop_exit
    _

</llo_original>
